<compile_context>
chip_gen: v7x
topology: tpu7x:2x2x1
jax: 0.10.0
libtpu: 0.0.40
codegen_flags: <defaults>
</compile_context>

<pallas_src>
import jax
import jax.numpy as jnp
from jax.experimental import pallas as pl
from jax.experimental.pallas import tpu as pltpu


LANES = 128
SUBLANES = 8
NUM_CORES = 2                         # leading "parallel" grid axis (v7x: 2 TCs/chip)
TARGET_TILE_BYTES = 2 * 1024 * 1024   # ~2 MiB/input tile -> <= 8 MiB double-buffered
                                      # (fits v5e's 16 MiB default and v7x's 64 MiB VMEM)


def _make_dice_kernel(tile_rows, rows, total_blocks, steps_per_core, needs_mask):
    """Build the kernel closure for a given (static) tiling."""
    groups = tile_rows // SUBLANES

    def _partial(x):
        # (tile_rows, 128) -> (groups, 8, 128) -> sum over groups -> (8, 128).
        # Pure VPU adds; layout-preserving reshape (last two dims stay (8,128)).
        return jnp.sum(x.reshape(groups, SUBLANES, LANES), axis=0)

    def kernel(o_ref, t_ref, part_ref):
        c = pl.program_id(0)   # "core" axis
        i = pl.program_id(1)   # streaming / reduction axis

        @pl.when(i == 0)
        def _():
            part_ref[...] = jnp.zeros_like(part_ref)

        def accumulate(apply_mask):
            o = o_ref[...]
            t = t_ref[...]
            # Cast only if needed (inputs travel over HBM in native dtype).
            if o.dtype != jnp.float32:
                o = o.astype(jnp.float32)
            if t.dtype != jnp.float32:
                t = t.astype(jnp.float32)
            if apply_mask:
                bi = c * steps_per_core + i          # unclamped logical block id
                row0 = bi * tile_rows
                row = jax.lax.broadcasted_iota(jnp.int32, (tile_rows, LANES), 0)
                valid = (row + row0) < rows
                o = jnp.where(valid, o, 0.0)
                t = jnp.where(valid, t, 0.0)
            part_ref[0] += _partial(o * t)           # intersect partials
            part_ref[1] += _partial(o * o)           # sum(o^2) partials
            part_ref[2] += _partial(t * t)           # sum(t^2) partials

        if needs_mask:
            # Only the globally-last block (possibly ragged) and phantom steps
            # (odd block count split over 2 cores) need masking.
            bi = c * steps_per_core + i

            @pl.when(bi >= total_blocks - 1)
            def _():
                accumulate(True)

            @pl.when(bi < total_blocks - 1)
            def _():
                accumulate(False)
        else:
            accumulate(False)

    return kernel


def dice_loss(output: jax.Array, target: jax.Array) -> jax.Array:
    """Pallas equivalent of DiceLoss.forward(output, target) -> scalar f32."""
    assert output.shape == target.shape, "output/target must have same shape"

    n = output.size
    o_item = jnp.dtype(output.dtype).itemsize
    t_item = jnp.dtype(target.dtype).itemsize

    # Row quantum: keep block sublane count a multiple of the packed-dtype tile
    # (8 for f32, 16 for bf16, 32 for int8).
    row_quantum = SUBLANES * max(1, 4 // min(o_item, t_item))

    rows = max(pl.cdiv(n, LANES), row_quantum)
    n_padded = rows * LANES

    # Tile sized for HBM streaming: ~2 MiB per input tile, multiple of the quantum.
    max_tile_rows = max(
        row_quantum,
        (TARGET_TILE_BYTES // (LANES * max(o_item, t_item)))
        // row_quantum * row_quantum,
    )
    tile_rows = min(max_tile_rows, (rows // row_quantum) * row_quantum)

    total_blocks = pl.cdiv(rows, tile_rows)
    steps_per_core = pl.cdiv(total_blocks, NUM_CORES)
    needs_mask = (rows % tile_rows != 0) or (total_blocks % NUM_CORES != 0)

    def _prep(x):
        x = x.reshape(-1)                      # free reshape (contiguous)
        if n_padded != n:
            # TODO(synk): this pad materializes a copy; only taken when n is not a
            # multiple of 128 (or tiny). The aligned common case is copy-free.
            x = jnp.pad(x, (0, n_padded - n))
        return x.reshape(rows, LANES)          # lane-dense 2D slab, native dtype

    o2d = _prep(output)
    t2d = _prep(target)

    def in_index_map(c, i):
        bi = c * steps_per_core + i
        # Clamp phantom steps (odd block count) onto the last block; the kernel
        # masks their contribution to zero.
        return (jnp.minimum(bi, total_blocks - 1), 0)

    parts = pl.pallas_call(
        _make_dice_kernel(tile_rows, rows, total_blocks, steps_per_core, needs_mask),
        out_shape=jax.ShapeDtypeStruct((NUM_CORES, 3, SUBLANES, LANES), jnp.float32),
        grid_spec=pltpu.PrefetchScalarGridSpec(
            num_scalar_prefetch=0,
            grid=(NUM_CORES, steps_per_core),
            in_specs=[
                pl.BlockSpec((tile_rows, LANES), in_index_map),
                pl.BlockSpec((tile_rows, LANES), in_index_map),
            ],
            out_specs=pl.BlockSpec(
                (None, 3, SUBLANES, LANES), lambda c, i: (c, 0, 0, 0)
            ),
        ),
        compiler_params=pltpu.CompilerParams(
            dimension_semantics=("parallel", "arbitrary"),
            vmem_limit_bytes=32 * 1024 * 1024,
        ),
    )(o2d, t2d)

    # Tiny epilogue: combine per-core / per-lane partials into the scalar loss.
    sums = jnp.sum(parts, axis=(0, 2, 3))      # [sum(o*t), sum(o^2), sum(t^2)]
    smooth = jnp.float32(1.0)
    loss = 1.0 - (2.0 * sums[0] + smooth) / (sums[1] + sums[2] + smooth)
    # torch: loss.mean() on a 0-d tensor is the scalar itself.
    return loss


def _dice_loss_ref(output, target):
    smooth = 1.0
    o = output.astype(jnp.float32)
    t = target.astype(jnp.float32)
    intersect = jnp.sum(o * t)
    union = jnp.sum(o * o) + jnp.sum(t * t)
    return 1.0 - (2.0 * intersect + smooth) / (union + smooth)


if __name__ == "__main__":
    key = jax.random.PRNGKey(0)
    k_o, k_t = jax.random.split(key)

    # NCHW inputs, e.g. soft segmentation probabilities vs. binary masks.
    shape = (2, 4, 16, 16)
    output = jax.nn.sigmoid(jax.random.normal(k_o, shape, dtype=jnp.float32))
    target = (jax.random.uniform(k_t, shape) > 0.5).astype(jnp.float32)

    loss = dice_loss(output, target)
    jax.block_until_ready(loss)

    ref = _dice_loss_ref(output, target)
    assert jnp.allclose(loss, ref, rtol=1e-5, atol=1e-6), (loss, ref)

    print("KERNEL_OK")
</pallas_src>

<mosaic_0001>
module attributes {stable_mosaic.version = 11 : i64} {
  func.func @kernel(%arg0: i32, %arg1: i32, %arg2: memref<16x128xf32, #tpu.memory_space<vmem>>, %arg3: memref<16x128xf32, #tpu.memory_space<vmem>>, %arg4: memref<1x3x8x128xf32, #tpu.memory_space<vmem>>) attributes {dimension_semantics = [#tpu.dimension_semantics<parallel>, #tpu.dimension_semantics<arbitrary>], iteration_bounds = array<i64: 2, 1>, scalar_prefetch = 0 : i64, scratch_operands = 0 : i64, tpu.core_type = #tpu.core_type<tc>, window_params = [{transform_indices = @transform_0, window_bounds = array<i64: 16, 128>}, {transform_indices = @transform_1, window_bounds = array<i64: 16, 128>}, {transform_indices = @transform_2, window_bounds = array<i64: 1, 3, 8, 128>}]} {
    %c0_i32 = arith.constant 0 : i32
    %0 = arith.cmpi eq, %arg1, %c0_i32 : i32
    %1 = arith.extui %0 : i1 to i32
    %c0_i32_0 = arith.constant 0 : i32
    %2 = arith.cmpi ne, %1, %c0_i32_0 : i32
    scf.if %2 {
      %cst = arith.constant 0.000000e+00 : f32
      %11 = vector.broadcast %cst : f32 to vector<3x8x128xf32>
      %c0 = arith.constant 0 : index
      %c0_5 = arith.constant 0 : index
      %c0_6 = arith.constant 0 : index
      %c0_7 = arith.constant 0 : index
      %12 = vector.load %arg4[%c0, %c0_5, %c0_6, %c0_7] : memref<1x3x8x128xf32, #tpu.memory_space<vmem>>, vector<1x3x8x128xf32>
      %13 = vector.shape_cast %12 : vector<1x3x8x128xf32> to vector<3x8x128xf32>
      %14 = vector.shape_cast %11 : vector<3x8x128xf32> to vector<1x3x8x128xf32>
      tpu.vector_store %arg4[%c0, %c0_5, %c0_6, %c0_7], %14 {strides = array<i32>} : memref<1x3x8x128xf32, #tpu.memory_space<vmem>>, vector<1x3x8x128xf32>,
    } else {
    }
    %c1_i32 = arith.constant 1 : i32
    %3 = arith.muli %arg0, %c1_i32 : i32
    %4 = arith.addi %3, %arg1 : i32
    %c0_i32_1 = arith.constant 0 : i32
    %5 = arith.cmpi sge, %4, %c0_i32_1 : i32
    %6 = arith.extui %5 : i1 to i32
    %c0_i32_2 = arith.constant 0 : i32
    %7 = arith.cmpi ne, %6, %c0_i32_2 : i32
    scf.if %7 {
      %c0 = arith.constant 0 : index
      %c0_5 = arith.constant 0 : index
      %11 = vector.load %arg2[%c0, %c0_5] : memref<16x128xf32, #tpu.memory_space<vmem>>, vector<16x128xf32>
      %c0_6 = arith.constant 0 : index
      %c0_7 = arith.constant 0 : index
      %12 = vector.load %arg3[%c0_6, %c0_7] : memref<16x128xf32, #tpu.memory_space<vmem>>, vector<16x128xf32>
      %c1_i32_8 = arith.constant 1 : i32
      %13 = arith.muli %arg0, %c1_i32_8 : i32
      %14 = arith.addi %13, %arg1 : i32
      %c16_i32 = arith.constant 16 : i32
      %15 = arith.muli %14, %c16_i32 : i32
      %16 = tpu.iota {dimensions = array<i32: 0>} : vector<16x128xi32>
      %17 = vector.broadcast %15 : i32 to vector<16x128xi32>
      %18 = arith.addi %16, %17 : vector<16x128xi32>
      %c16_i32_9 = arith.constant 16 : i32
      %19 = vector.broadcast %c16_i32_9 : i32 to vector<16x128xi32>
      %20 = arith.cmpi slt, %18, %19 : vector<16x128xi32>
      %cst = arith.constant 0.000000e+00 : f32
      %21 = vector.broadcast %cst : f32 to vector<16x128xf32>
      %22 = arith.select %20, %11, %21 : vector<16x128xi1>, vector<16x128xf32>
      %cst_10 = arith.constant 0.000000e+00 : f32
      %23 = vector.broadcast %cst_10 : f32 to vector<16x128xf32>
      %24 = arith.select %20, %12, %23 : vector<16x128xi1>, vector<16x128xf32>
      %c0_11 = arith.constant 0 : index
      %c0_12 = arith.constant 0 : index
      %c0_13 = arith.constant 0 : index
      %c0_14 = arith.constant 0 : index
      %25 = vector.load %arg4[%c0_11, %c0_12, %c0_13, %c0_14] : memref<1x3x8x128xf32, #tpu.memory_space<vmem>>, vector<1x1x8x128xf32>
      %26 = vector.shape_cast %25 : vector<1x1x8x128xf32> to vector<8x128xf32>
      %27 = arith.mulf %22, %24 : vector<16x128xf32>
      %28 = vector.shape_cast %27 : vector<16x128xf32> to vector<2x8x128xf32>
      %cst_15 = arith.constant dense<0.000000e+00> : vector<8x128xf32>
      %29 = vector.multi_reduction <add>, %28, %cst_15 [0] : vector<2x8x128xf32> to vector<8x128xf32>
      %30 = arith.addf %26, %29 : vector<8x128xf32>
      %c0_16 = arith.constant 0 : index
      %c0_17 = arith.constant 0 : index
      %c0_18 = arith.constant 0 : index
      %c0_19 = arith.constant 0 : index
      %31 = vector.load %arg4[%c0_16, %c0_17, %c0_18, %c0_19] : memref<1x3x8x128xf32, #tpu.memory_space<vmem>>, vector<1x1x8x128xf32>
      %32 = vector.shape_cast %31 : vector<1x1x8x128xf32> to vector<8x128xf32>
      %33 = vector.shape_cast %30 : vector<8x128xf32> to vector<1x1x8x128xf32>
      tpu.vector_store %arg4[%c0_16, %c0_17, %c0_18, %c0_19], %33 {strides = array<i32>} : memref<1x3x8x128xf32, #tpu.memory_space<vmem>>, vector<1x1x8x128xf32>,
      %c0_20 = arith.constant 0 : index
      %c1 = arith.constant 1 : index
      %c0_21 = arith.constant 0 : index
      %c0_22 = arith.constant 0 : index
      %34 = vector.load %arg4[%c0_20, %c1, %c0_21, %c0_22] : memref<1x3x8x128xf32, #tpu.memory_space<vmem>>, vector<1x1x8x128xf32>
      %35 = vector.shape_cast %34 : vector<1x1x8x128xf32> to vector<8x128xf32>
      %36 = arith.mulf %22, %22 : vector<16x128xf32>
      %37 = vector.shape_cast %36 : vector<16x128xf32> to vector<2x8x128xf32>
      %cst_23 = arith.constant dense<0.000000e+00> : vector<8x128xf32>
      %38 = vector.multi_reduction <add>, %37, %cst_23 [0] : vector<2x8x128xf32> to vector<8x128xf32>
      %39 = arith.addf %35, %38 : vector<8x128xf32>
      %c0_24 = arith.constant 0 : index
      %c1_25 = arith.constant 1 : index
      %c0_26 = arith.constant 0 : index
      %c0_27 = arith.constant 0 : index
      %40 = vector.load %arg4[%c0_24, %c1_25, %c0_26, %c0_27] : memref<1x3x8x128xf32, #tpu.memory_space<vmem>>, vector<1x1x8x128xf32>
      %41 = vector.shape_cast %40 : vector<1x1x8x128xf32> to vector<8x128xf32>
      %42 = vector.shape_cast %39 : vector<8x128xf32> to vector<1x1x8x128xf32>
      tpu.vector_store %arg4[%c0_24, %c1_25, %c0_26, %c0_27], %42 {strides = array<i32>} : memref<1x3x8x128xf32, #tpu.memory_space<vmem>>, vector<1x1x8x128xf32>,
      %c0_28 = arith.constant 0 : index
      %c2 = arith.constant 2 : index
      %c0_29 = arith.constant 0 : index
      %c0_30 = arith.constant 0 : index
      %43 = vector.load %arg4[%c0_28, %c2, %c0_29, %c0_30] : memref<1x3x8x128xf32, #tpu.memory_space<vmem>>, vector<1x1x8x128xf32>
      %44 = vector.shape_cast %43 : vector<1x1x8x128xf32> to vector<8x128xf32>
      %45 = arith.mulf %24, %24 : vector<16x128xf32>
      %46 = vector.shape_cast %45 : vector<16x128xf32> to vector<2x8x128xf32>
      %cst_31 = arith.constant dense<0.000000e+00> : vector<8x128xf32>
      %47 = vector.multi_reduction <add>, %46, %cst_31 [0] : vector<2x8x128xf32> to vector<8x128xf32>
      %48 = arith.addf %44, %47 : vector<8x128xf32>
      %c0_32 = arith.constant 0 : index
      %c2_33 = arith.constant 2 : index
      %c0_34 = arith.constant 0 : index
      %c0_35 = arith.constant 0 : index
      %49 = vector.load %arg4[%c0_32, %c2_33, %c0_34, %c0_35] : memref<1x3x8x128xf32, #tpu.memory_space<vmem>>, vector<1x1x8x128xf32>
      %50 = vector.shape_cast %49 : vector<1x1x8x128xf32> to vector<8x128xf32>
      %51 = vector.shape_cast %48 : vector<8x128xf32> to vector<1x1x8x128xf32>
      tpu.vector_store %arg4[%c0_32, %c2_33, %c0_34, %c0_35], %51 {strides = array<i32>} : memref<1x3x8x128xf32, #tpu.memory_space<vmem>>, vector<1x1x8x128xf32>,
    } else {
    }
    %c0_i32_3 = arith.constant 0 : i32
    %8 = arith.cmpi slt, %4, %c0_i32_3 : i32
    %9 = arith.extui %8 : i1 to i32
    %c0_i32_4 = arith.constant 0 : i32
    %10 = arith.cmpi ne, %9, %c0_i32_4 : i32
    scf.if %10 {
      %c0 = arith.constant 0 : index
      %c0_5 = arith.constant 0 : index
      %11 = vector.load %arg2[%c0, %c0_5] : memref<16x128xf32, #tpu.memory_space<vmem>>, vector<16x128xf32>
      %c0_6 = arith.constant 0 : index
      %c0_7 = arith.constant 0 : index
      %12 = vector.load %arg3[%c0_6, %c0_7] : memref<16x128xf32, #tpu.memory_space<vmem>>, vector<16x128xf32>
      %c0_8 = arith.constant 0 : index
      %c0_9 = arith.constant 0 : index
      %c0_10 = arith.constant 0 : index
      %c0_11 = arith.constant 0 : index
      %13 = vector.load %arg4[%c0_8, %c0_9, %c0_10, %c0_11] : memref<1x3x8x128xf32, #tpu.memory_space<vmem>>, vector<1x1x8x128xf32>
      %14 = vector.shape_cast %13 : vector<1x1x8x128xf32> to vector<8x128xf32>
      %15 = arith.mulf %11, %12 : vector<16x128xf32>
      %16 = vector.shape_cast %15 : vector<16x128xf32> to vector<2x8x128xf32>
      %cst = arith.constant dense<0.000000e+00> : vector<8x128xf32>
      %17 = vector.multi_reduction <add>, %16, %cst [0] : vector<2x8x128xf32> to vector<8x128xf32>
      %18 = arith.addf %14, %17 : vector<8x128xf32>
      %c0_12 = arith.constant 0 : index
      %c0_13 = arith.constant 0 : index
      %c0_14 = arith.constant 0 : index
      %c0_15 = arith.constant 0 : index
      %19 = vector.load %arg4[%c0_12, %c0_13, %c0_14, %c0_15] : memref<1x3x8x128xf32, #tpu.memory_space<vmem>>, vector<1x1x8x128xf32>
      %20 = vector.shape_cast %19 : vector<1x1x8x128xf32> to vector<8x128xf32>
      %21 = vector.shape_cast %18 : vector<8x128xf32> to vector<1x1x8x128xf32>
      tpu.vector_store %arg4[%c0_12, %c0_13, %c0_14, %c0_15], %21 {strides = array<i32>} : memref<1x3x8x128xf32, #tpu.memory_space<vmem>>, vector<1x1x8x128xf32>,
      %c0_16 = arith.constant 0 : index
      %c1 = arith.constant 1 : index
      %c0_17 = arith.constant 0 : index
      %c0_18 = arith.constant 0 : index
      %22 = vector.load %arg4[%c0_16, %c1, %c0_17, %c0_18] : memref<1x3x8x128xf32, #tpu.memory_space<vmem>>, vector<1x1x8x128xf32>
      %23 = vector.shape_cast %22 : vector<1x1x8x128xf32> to vector<8x128xf32>
      %24 = arith.mulf %11, %11 : vector<16x128xf32>
      %25 = vector.shape_cast %24 : vector<16x128xf32> to vector<2x8x128xf32>
      %cst_19 = arith.constant dense<0.000000e+00> : vector<8x128xf32>
      %26 = vector.multi_reduction <add>, %25, %cst_19 [0] : vector<2x8x128xf32> to vector<8x128xf32>
      %27 = arith.addf %23, %26 : vector<8x128xf32>
      %c0_20 = arith.constant 0 : index
      %c1_21 = arith.constant 1 : index
      %c0_22 = arith.constant 0 : index
      %c0_23 = arith.constant 0 : index
      %28 = vector.load %arg4[%c0_20, %c1_21, %c0_22, %c0_23] : memref<1x3x8x128xf32, #tpu.memory_space<vmem>>, vector<1x1x8x128xf32>
      %29 = vector.shape_cast %28 : vector<1x1x8x128xf32> to vector<8x128xf32>
      %30 = vector.shape_cast %27 : vector<8x128xf32> to vector<1x1x8x128xf32>
      tpu.vector_store %arg4[%c0_20, %c1_21, %c0_22, %c0_23], %30 {strides = array<i32>} : memref<1x3x8x128xf32, #tpu.memory_space<vmem>>, vector<1x1x8x128xf32>,
      %c0_24 = arith.constant 0 : index
      %c2 = arith.constant 2 : index
      %c0_25 = arith.constant 0 : index
      %c0_26 = arith.constant 0 : index
      %31 = vector.load %arg4[%c0_24, %c2, %c0_25, %c0_26] : memref<1x3x8x128xf32, #tpu.memory_space<vmem>>, vector<1x1x8x128xf32>
      %32 = vector.shape_cast %31 : vector<1x1x8x128xf32> to vector<8x128xf32>
      %33 = arith.mulf %12, %12 : vector<16x128xf32>
      %34 = vector.shape_cast %33 : vector<16x128xf32> to vector<2x8x128xf32>
      %cst_27 = arith.constant dense<0.000000e+00> : vector<8x128xf32>
      %35 = vector.multi_reduction <add>, %34, %cst_27 [0] : vector<2x8x128xf32> to vector<8x128xf32>
      %36 = arith.addf %32, %35 : vector<8x128xf32>
      %c0_28 = arith.constant 0 : index
      %c2_29 = arith.constant 2 : index
      %c0_30 = arith.constant 0 : index
      %c0_31 = arith.constant 0 : index
      %37 = vector.load %arg4[%c0_28, %c2_29, %c0_30, %c0_31] : memref<1x3x8x128xf32, #tpu.memory_space<vmem>>, vector<1x1x8x128xf32>
      %38 = vector.shape_cast %37 : vector<1x1x8x128xf32> to vector<8x128xf32>
      %39 = vector.shape_cast %36 : vector<8x128xf32> to vector<1x1x8x128xf32>
      tpu.vector_store %arg4[%c0_28, %c2_29, %c0_30, %c0_31], %39 {strides = array<i32>} : memref<1x3x8x128xf32, #tpu.memory_space<vmem>>, vector<1x1x8x128xf32>,
    } else {
    }
    return
  }
  func.func @transform_0(%arg0: i32, %arg1: i32) -> (i32, i32) {
    %c1_i32 = arith.constant 1 : i32
    %0 = arith.muli %arg0, %c1_i32 : i32
    %1 = arith.addi %0, %arg1 : i32
    %c0_i32 = arith.constant 0 : i32
    %2 = arith.minsi %1, %c0_i32 : i32
    %c0_i32_0 = arith.constant 0 : i32
    %c0_i32_1 = arith.constant 0 : i32
    return %2, %c0_i32_0 : i32, i32
  }
  func.func @transform_1(%arg0: i32, %arg1: i32) -> (i32, i32) {
    %c1_i32 = arith.constant 1 : i32
    %0 = arith.muli %arg0, %c1_i32 : i32
    %1 = arith.addi %0, %arg1 : i32
    %c0_i32 = arith.constant 0 : i32
    %2 = arith.minsi %1, %c0_i32 : i32
    %c0_i32_0 = arith.constant 0 : i32
    %c0_i32_1 = arith.constant 0 : i32
    return %2, %c0_i32_0 : i32, i32
  }
  func.func @transform_2(%arg0: i32, %arg1: i32) -> (i32, i32, i32, i32) {
    %c0_i32 = arith.constant 0 : i32
    %c0_i32_0 = arith.constant 0 : i32
    %c0_i32_1 = arith.constant 0 : i32
    %c0_i32_2 = arith.constant 0 : i32
    return %arg0, %c0_i32, %c0_i32_0, %c0_i32_1 : i32, i32, i32, i32
  }
}

</mosaic_0001>

<llo_original>
// kernel: tpu_custom_call.1
$region0: #{tpu_custom_call.1}
  #allocation0 [shape = 'u32[]', space=smem, size = 0x4, offset = 0x4, fixed_abs, tag = 'smem constant byte address 0x4 - core index']
  #allocation1 [shape = 'u32[144,128]{1,0:T(1,128)}', space=vmem, size = 0x12000, scoped, tag = 'internal scratch']
  %s0 = inlined_call_operand.hbm [shape: f32[16,128], index: 0, kind: input, shape index: {}]
  %s1 = inlined_call_operand.hbm [shape: f32[16,128], index: 1, kind: input, shape index: {}]
  %s2 = inlined_call_operand.hbm [shape: f32[2,3,8,128], index: 2, kind: output, shape index: {}]
  %s3 = sld [smem:[#allocation0]]
  $region61: #{tpu_custom_call.1} parent=0
    _
  %s5 = ssub.s32 1, %s3
  %s6 = scalar_select 0, %s5, %s3
  $region1: #{tpu_custom_call.1} parent=0
    #allocation2 [shape = 'u8[16384]{0}', space=vmem, size = 0x4000, scoped, tag = 'input window, operand 0']
    #allocation3 [shape = 's32[2]{0}', space=sflag, size = 0x8, scoped, tag = 'scoped memory for tpu_custom_call.1']
    #allocation4 [shape = 's32[2]{0}', space=sflag, size = 0x8, scoped, tag = 'scoped memory for tpu_custom_call.1']
    #allocation5 [shape = 'u8[16384]{0}', space=vmem, size = 0x4000, scoped, tag = 'input window, operand 1']
    #allocation6 [shape = 's32[2]{0}', space=sflag, size = 0x8, scoped, tag = 'scoped memory for tpu_custom_call.1']
    #allocation7 [shape = 'u8[24576]{0}', space=vmem, size = 0x6000, scoped, tag = 'output window, operand 0']
    %7 = vsyncpa [#allocation3], 0
    %s8 = scalar_lea.sflag [#allocation3], 1
    %9 = vsyncpa %s8, 0
    %10 = vsyncpa [#allocation6], 0
    %s11 = scalar_lea.sflag [#allocation6], 1
    %12 = vsyncpa %s11, 0
    %13 = vsyncpa [#allocation4], 0
    %s14 = scalar_lea.sflag [#allocation4], 1
    %15 = vsyncpa %s14, 0
    loop: start=0, step=1, limit=4
    $region2: #{tpu_custom_call.1} parent=1 // loop_pre_header
      _
    $region3: #{tpu_custom_call.1} parent=1 // loop_header
      %s17 = sphi 0, %s21
      %p18 = scmp.ge.s32.totalorder %s17, 4
      %s24 = sphi 0, %s36
      %s25 = sphi 0, %s32
      %s26 = sphi 0, %s24
      %s27 = sphi 0, %s25
      %s28 = sphi 0, %s26
      %s29 = sphi 0, %s27
      %s45 = sphi 0, %s47
      %s48 = sphi 0, %s45
      %s49 = sphi 0, %s48
      %s65 = sphi 0, %s49
      %s77 = sphi 0, %s79
      %s80 = sphi 0, %s77
      %s81 = sphi 0, %s80
      %s97 = sphi 0, %s81
      %s103 = sphi 0, %s105
      %s106 = sphi 0, %s103
      %s107 = sphi 0, %s106
      %s123 = sphi 0, %s107
    $region4: #{tpu_custom_call.1} parent=1 // loop_header_branch
      %20 = sbr.rel (%p18) target = $region8
    $region5: #{tpu_custom_call.1} parent=1 // loop_body
      %s22 = ssub.s32 %s17, 1
      %s23 = ssub.s32 %s17, 2
      %s30 = sadd.s32 1, %s25
      %p31 = scmp.ge.s32.totalorder %s30, 1
      %s32 = scalar_select %p31, 0, %s30
      %s33 = sadd.s32 1, %s24
      %s34 = scalar_select %p31, %s33, %s24
      %p35 = scmp.ge.s32.totalorder %s34, 2
      %s36 = scalar_select %p35, 0, %s34
      %s37 = sadd.s32 %s24, %s25
      %p38 = scmp.lt.s32.totalorder %s37, 0
      %s39 = scalar_select %p38, %s37, 0
      %s40 = sadd.s32 %s36, %s32
      %p41 = scmp.lt.s32.totalorder %s40, 0
      %s42 = scalar_select %p41, %s40, 0
      %s43 = ssub.s32 %s39, %s42
      %p44 = scmp.eq.s32.totalorder %s43, 0
      %s46 = sadd.s32 %s45, 1
      %s47 = scalar_select %p44, %s45, %s46
      %p50 = pneg %p44
      %p51 = scmp.eq.s32.totalorder %s17, 1
      %p52 = por %p50, %p51
      %p53 = scmp.ne.s32.totalorder %s45, %s48
      %p54 = scmp.eq.s32.totalorder %s17, 0
      %p55 = por %p53, %p54
      %p56 = scmp.ne.s32.totalorder %s45, %s48
      %p57 = scmp.eq.s32.totalorder %s22, 1
      %p58 = por %p56, %p57
      %p59 = scmp.ne.s32.totalorder %s48, %s49
      %p60 = scmp.eq.s32.totalorder %s22, 0
      %p61 = por %p59, %p60
      %p62 = scmp.ne.s32.totalorder %s48, %s49
      %p63 = scmp.eq.s32.totalorder %s23, 1
      %p64 = por %p62, %p63
      %p66 = scmp.ne.s32.totalorder %s49, %s65
      %p67 = scmp.eq.s32.totalorder %s23, 0
      %p68 = por %p66, %p67
      %s69 = sadd.s32 %s24, %s25
      %p70 = scmp.lt.s32.totalorder %s69, 0
      %s71 = scalar_select %p70, %s69, 0
      %s72 = sadd.s32 %s36, %s32
      %p73 = scmp.lt.s32.totalorder %s72, 0
      %s74 = scalar_select %p73, %s72, 0
      %s75 = ssub.s32 %s71, %s74
      %p76 = scmp.eq.s32.totalorder %s75, 0
      %s78 = sadd.s32 %s77, 1
      %s79 = scalar_select %p76, %s77, %s78
      %p82 = pneg %p76
      %p83 = scmp.eq.s32.totalorder %s17, 1
      %p84 = por %p82, %p83
      %p85 = scmp.ne.s32.totalorder %s77, %s80
      %p86 = scmp.eq.s32.totalorder %s17, 0
      %p87 = por %p85, %p86
      %p88 = scmp.ne.s32.totalorder %s77, %s80
      %p89 = scmp.eq.s32.totalorder %s22, 1
      %p90 = por %p88, %p89
      %p91 = scmp.ne.s32.totalorder %s80, %s81
      %p92 = scmp.eq.s32.totalorder %s22, 0
      %p93 = por %p91, %p92
      %p94 = scmp.ne.s32.totalorder %s80, %s81
      %p95 = scmp.eq.s32.totalorder %s23, 1
      %p96 = por %p94, %p95
      %p98 = scmp.ne.s32.totalorder %s81, %s97
      %p99 = scmp.eq.s32.totalorder %s23, 0
      %p100 = por %p98, %p99
      %s101 = ssub.s32 %s24, %s36
      %p102 = scmp.eq.s32.totalorder %s101, 0
      %s104 = sadd.s32 %s103, 1
      %s105 = scalar_select %p102, %s103, %s104
      %p108 = pneg %p102
      %p109 = scmp.eq.s32.totalorder %s17, 1
      %p110 = por %p108, %p109
      %p111 = scmp.ne.s32.totalorder %s103, %s106
      %p112 = scmp.eq.s32.totalorder %s17, 0
      %p113 = por %p111, %p112
      %p114 = scmp.ne.s32.totalorder %s103, %s106
      %p115 = scmp.eq.s32.totalorder %s22, 1
      %p116 = por %p114, %p115
      %p117 = scmp.ne.s32.totalorder %s106, %s107
      %p118 = scmp.eq.s32.totalorder %s22, 0
      %p119 = por %p117, %p118
      %p120 = scmp.ne.s32.totalorder %s106, %s107
      %p121 = scmp.eq.s32.totalorder %s23, 1
      %p122 = por %p120, %p121
      %p124 = scmp.ne.s32.totalorder %s107, %s123
      %p125 = scmp.eq.s32.totalorder %s23, 0
      %p126 = por %p124, %p125
      %p127 = scmp.le.s32.totalorder 1, %s17
      %p128 = scmp.lt.s32.totalorder %s17, 3
      %p129 = pnand %p127, %p128
      %p130 = pneg %p129
      // Predicated region
      $region9: #{tpu_custom_call.1} parent=5 // pred_check
        _
      $region10: #{tpu_custom_call.1} parent=5 // pred_check_branch
        %132 = sbr.rel (%p129) target = $region12
      $region11: #{tpu_custom_call.1} parent=5 // pred_region
        %s133 = ssub.s32 %s17, 1
      $region12: #{tpu_custom_call.1} parent=5 // pred_fallthru
        _
      %p134 = scmp.lt.s32.totalorder %s17, 2
      // Predicated region
      $region13: #{tpu_custom_call.1} parent=5 // pred_check
        %p135 = pneg %p134
      $region14: #{tpu_custom_call.1} parent=5 // pred_check_branch
        %137 = sbr.rel (%p135) target = $region16
      $region15: #{tpu_custom_call.1} parent=5 // pred_region
        // Predicated region
        $region17: #{tpu_custom_call.1} parent=15 // pred_check
          %p138 = pneg %p55
        $region18: #{tpu_custom_call.1} parent=15 // pred_check_branch
          %140 = sbr.rel (%p138) target = $region20
        $region19: #{tpu_custom_call.1} parent=15 // pred_region
          %s141 = sand.u32 %s45, 1
          %s142 = scalar_lea.sflag [#allocation3], %s141
          %s143 = sand.u32 %s45, 1
          %s144 = smul.addr %s143, 16
          %s145 = scalar_lea.vmem [#allocation2], %s144
          %s146 = sadd.s32 %s24, %s25
          %p147 = scmp.lt.s32.totalorder %s146, 0
          %s148 = scalar_select %p147, %s146, 0
          %s149 = smul.u32 2, %s148
          %s151 = ssub.s32 256, 256
          %152 = vsyncadd %s142, %s151
          %s153 = smul.addr %s149, 128
          %s154 = scalar_lea.hbm %s0, %s153
          %s155 = sshll.u32 %s145, 4
          %s156 = int_to_ptr.vmem [resolvable:$true] %s155
          %161 = dma.hbm_to_vmem [thread:$0]  %s154, 256, %s156, %s142, 128, 128, 8
        $region20: #{tpu_custom_call.1} parent=15 // pred_fallthru
          _
        // Predicated region
        $region21: #{tpu_custom_call.1} parent=15 // pred_check
          %p162 = pneg %p87
        $region22: #{tpu_custom_call.1} parent=15 // pred_check_branch
          %164 = sbr.rel (%p162) target = $region24
        $region23: #{tpu_custom_call.1} parent=15 // pred_region
          %s165 = sand.u32 %s77, 1
          %s166 = scalar_lea.sflag [#allocation6], %s165
          %s167 = sand.u32 %s77, 1
          %s168 = smul.addr %s167, 16
          %s169 = scalar_lea.vmem [#allocation5], %s168
          %s170 = sadd.s32 %s24, %s25
          %p171 = scmp.lt.s32.totalorder %s170, 0
          %s172 = scalar_select %p171, %s170, 0
          %s173 = smul.u32 2, %s172
          %s175 = ssub.s32 256, 256
          %176 = vsyncadd %s166, %s175
          %s177 = smul.addr %s173, 128
          %s178 = scalar_lea.hbm %s1, %s177
          %s179 = sshll.u32 %s169, 4
          %s180 = int_to_ptr.vmem [resolvable:$true] %s179
          %185 = dma.hbm_to_vmem [thread:$0]  %s178, 256, %s180, %s166, 128, 128, 8
        $region24: #{tpu_custom_call.1} parent=15 // pred_fallthru
          _
      $region16: #{tpu_custom_call.1} parent=5 // pred_fallthru
        _
      %p186 = scmp.le.s32.totalorder 1, %s17
      %p187 = scmp.lt.s32.totalorder %s17, 3
      %p188 = pnand %p186, %p187
      %p189 = pneg %p188
      // Predicated region
      $region25: #{tpu_custom_call.1} parent=5 // pred_check
        _
      $region26: #{tpu_custom_call.1} parent=5 // pred_check_branch
        %191 = sbr.rel (%p188) target = $region28
      $region27: #{tpu_custom_call.1} parent=5 // pred_region
        %s192 = ssub.s32 %s17, 1
        %s193 = sand.u32 %s48, 1
        %s194 = scalar_lea.sflag [#allocation3], %s193
        %s195 = sand.u32 %s48, 1
        %s196 = smul.addr %s195, 16
        %s197 = scalar_lea.vmem [#allocation2], %s196
        // Predicated region
        $region29: #{tpu_custom_call.1} parent=27 // pred_check
          %p198 = pneg %p61
        $region30: #{tpu_custom_call.1} parent=27 // pred_check_branch
          %200 = sbr.rel (%p198) target = $region32
        $region31: #{tpu_custom_call.1} parent=27 // pred_region
          %201 = dma.done %s194, 256
        $region32: #{tpu_custom_call.1} parent=27 // pred_fallthru
          _
        %s202 = sand.u32 %s80, 1
        %s203 = scalar_lea.sflag [#allocation6], %s202
        %s204 = sand.u32 %s80, 1
        %s205 = smul.addr %s204, 16
        %s206 = scalar_lea.vmem [#allocation5], %s205
        // Predicated region
        $region33: #{tpu_custom_call.1} parent=27 // pred_check
          %p207 = pneg %p93
        $region34: #{tpu_custom_call.1} parent=27 // pred_check_branch
          %209 = sbr.rel (%p207) target = $region36
        $region35: #{tpu_custom_call.1} parent=27 // pred_region
          %210 = dma.done %s203, 256
        $region36: #{tpu_custom_call.1} parent=27 // pred_fallthru
          _
        %s211 = sand.u32 %s48, 1
        %s212 = scalar_lea.sflag [#allocation3], %s211
        %s213 = sand.u32 %s48, 1
        %s214 = smul.addr %s213, 16
        %s215 = scalar_lea.vmem [#allocation2], %s214
        %p216 = pneg %p61
        %p217 = pneg %p58
        %s218 = sand.u32 %s80, 1
        %s219 = scalar_lea.sflag [#allocation6], %s218
        %s220 = sand.u32 %s80, 1
        %s221 = smul.addr %s220, 16
        %s222 = scalar_lea.vmem [#allocation5], %s221
        %p223 = pneg %p93
        %p224 = pneg %p90
        %p225 = pneg %p119
        %p226 = pneg %p116
        %s227 = sand.u32 %s106, 1
        %s228 = scalar_lea.sflag [#allocation4], %s227
        %s229 = sand.u32 %s106, 1
        %s230 = smul.addr %s229, 24
        %s231 = scalar_lea.vmem [#allocation7], %s230
        %s232 = sadd.s32 %s26, %s27
        %p233 = scmp.lt.s32.totalorder %s232, 0
        %s234 = scalar_select %p233, %s232, 0
        %s235 = smul.u32 2, %s234
        %s236 = sadd.s32 %s26, %s27
        %p237 = scmp.lt.s32.totalorder %s236, 0
        %s238 = scalar_select %p237, %s236, 0
        %s239 = smul.u32 2, %s238
        %p240 = scmp.eq.s32.totalorder %s27, 0
        // Predicated region
        $region37: #{tpu_custom_call.1} parent=27 // pred_check
          %p241 = pneg %p240
        $region38: #{tpu_custom_call.1} parent=27 // pred_check_branch
          %243 = sbr.rel (%p241) target = $region40
        $region39: #{tpu_custom_call.1} parent=27 // pred_region
          %244 = vst [vmem:[%s231] sm:$0xff] 0.0
          %245 = vst [vmem:[%s231 + $0x8] sm:$0xff] 0.0
          %246 = vst [vmem:[%s231 + $0x10] sm:$0xff] 0.0
        $region40: #{tpu_custom_call.1} parent=27 // pred_fallthru
          _
        %s247 = sadd.s32 %s26, %s27
        %p248 = scmp.ge.s32.totalorder %s247, 0
        // Predicated region
        $region41: #{tpu_custom_call.1} parent=27 // pred_check
          %p249 = pneg %p248
        $region42: #{tpu_custom_call.1} parent=27 // pred_check_branch
          %251 = sbr.rel (%p249) target = $region44
        $region43: #{tpu_custom_call.1} parent=27 // pred_region
          %v252 = vld [vmem:[%s197] sm:$0xff]
          %v253 = vld [vmem:[%s197 + $0x8] sm:$0xff]
          %v254 = vld [vmem:[%s206] sm:$0xff]
          %v255 = vld [vmem:[%s206 + $0x8] sm:$0xff]
          %s256 = smul.u32 %s247, 16
          %v257 = vlaneseq
          %v258 = vshrl.u32 %v257, 7
          %v259 = vadd.s32 %v258, 8
          %v260 = vstv %s256
          %v261 = vadd.s32 %v258, %v260
          %v262 = vadd.s32 %v259, %v260
          %vm263 = vcmp.lt.s32.totalorder %v261, 16
          %vm264 = vcmp.lt.s32.totalorder %v262, 16
          %v265 = vsel %vm263, %v252, 0.0
          %v266 = vsel %vm264, %v253, 0.0
          %v267 = vsel %vm263, %v254, 0.0
          %v268 = vsel %vm264, %v255, 0.0
          %v269 = vld [vmem:[%s231] sm:$0xff]
          %v270 = vmul.f32 %v265, %v267
          %v271 = vmul.f32 %v266, %v268
          %v272 = vadd.f32 %v270, %v271
          %v273 = vadd.f32 %v269, %v272
          %274 = vst [vmem:[%s231] sm:$0xff] %v273
          %s275 = scalar_lea.vmem %s231, 8 [#allocation7]
          %v276 = vld [vmem:[%s275] sm:$0xff]
          %v277 = vmul.f32 %v265, %v265
          %v278 = vmul.f32 %v266, %v266
          %v279 = vadd.f32 %v277, %v278
          %v280 = vadd.f32 %v276, %v279
          %281 = vst [vmem:[%s275] sm:$0xff] %v280
          %s282 = scalar_lea.vmem %s231, 16 [#allocation7]
          %v283 = vld [vmem:[%s282] sm:$0xff]
          %v284 = vmul.f32 %v267, %v267
          %v285 = vmul.f32 %v268, %v268
          %v286 = vadd.f32 %v284, %v285
          %v287 = vadd.f32 %v283, %v286
          %288 = vst [vmem:[%s282] sm:$0xff] %v287
        $region44: #{tpu_custom_call.1} parent=27 // pred_fallthru
          _
        %p289 = scmp.lt.s32.totalorder %s247, 0
        // Predicated region
        $region45: #{tpu_custom_call.1} parent=27 // pred_check
          %p290 = pneg %p289
        $region46: #{tpu_custom_call.1} parent=27 // pred_check_branch
          %292 = sbr.rel (%p290) target = $region48
        $region47: #{tpu_custom_call.1} parent=27 // pred_region
          %v293 = vld [vmem:[%s197] sm:$0xff]
          %v294 = vld [vmem:[%s197 + $0x8] sm:$0xff]
          %v295 = vld [vmem:[%s206] sm:$0xff]
          %v296 = vld [vmem:[%s206 + $0x8] sm:$0xff]
          %v297 = vld [vmem:[%s231] sm:$0xff]
          %v298 = vmul.f32 %v293, %v295
          %v299 = vmul.f32 %v294, %v296
          %v300 = vadd.f32 %v298, %v299
          %v301 = vadd.f32 %v297, %v300
          %302 = vst [vmem:[%s231] sm:$0xff] %v301
          %s303 = scalar_lea.vmem %s231, 8 [#allocation7]
          %v304 = vld [vmem:[%s303] sm:$0xff]
          %v305 = vmul.f32 %v293, %v293
          %v306 = vmul.f32 %v294, %v294
          %v307 = vadd.f32 %v305, %v306
          %v308 = vadd.f32 %v304, %v307
          %309 = vst [vmem:[%s303] sm:$0xff] %v308
          %s310 = scalar_lea.vmem %s231, 16 [#allocation7]
          %v311 = vld [vmem:[%s310] sm:$0xff]
          %v312 = vmul.f32 %v295, %v295
          %v313 = vmul.f32 %v296, %v296
          %v314 = vadd.f32 %v312, %v313
          %v315 = vadd.f32 %v311, %v314
          %316 = vst [vmem:[%s310] sm:$0xff] %v315
        $region48: #{tpu_custom_call.1} parent=27 // pred_fallthru
          _
        %s317 = sand.u32 %s106, 1
        %s318 = scalar_lea.sflag [#allocation4], %s317
        %s319 = sand.u32 %s106, 1
        %s320 = smul.addr %s319, 24
        %s321 = scalar_lea.vmem [#allocation7], %s320
        // Predicated region
        $region49: #{tpu_custom_call.1} parent=27 // pred_check
          %p322 = pneg %p116
        $region50: #{tpu_custom_call.1} parent=27 // pred_check_branch
          %324 = sbr.rel (%p322) target = $region52
        $region51: #{tpu_custom_call.1} parent=27 // pred_region
          %s326 = ssub.s32 384, 384
          %327 = vsyncadd %s318, %s326
          %s328 = smul.addr %s26, 3
          %s329 = smul.addr %s328, 128
          %s330 = scalar_lea.hbm %s2, %s329
          %s331 = sshll.u32 %s321, 4
          %s332 = int_to_ptr.vmem [resolvable:$true] %s331
          %337 = dma.vmem_to_hbm [thread:$0]  %s332, 384, %s330, %s318, 128, 128, 8
        $region52: #{tpu_custom_call.1} parent=27 // pred_fallthru
          _
      $region28: #{tpu_custom_call.1} parent=5 // pred_fallthru
        _
      %p338 = scmp.le.s32.totalorder 2, %s17
      // Predicated region
      $region53: #{tpu_custom_call.1} parent=5 // pred_check
        %p339 = pneg %p338
      $region54: #{tpu_custom_call.1} parent=5 // pred_check_branch
        %341 = sbr.rel (%p339) target = $region56
      $region55: #{tpu_custom_call.1} parent=5 // pred_region
        %s342 = ssub.s32 %s17, 2
        // Predicated region
        $region57: #{tpu_custom_call.1} parent=55 // pred_check
          %p343 = pneg %p122
        $region58: #{tpu_custom_call.1} parent=55 // pred_check_branch
          %345 = sbr.rel (%p343) target = $region60
        $region59: #{tpu_custom_call.1} parent=55 // pred_region
          %s346 = sand.u32 %s107, 1
          %s347 = scalar_lea.sflag [#allocation4], %s346
          %s348 = sand.u32 %s107, 1
          %s349 = smul.addr %s348, 24
          %s350 = scalar_lea.vmem [#allocation7], %s349
          %351 = dma.done %s347, 384
        $region60: #{tpu_custom_call.1} parent=55 // pred_fallthru
          _
      $region56: #{tpu_custom_call.1} parent=5 // pred_fallthru
        _
    $region6: #{tpu_custom_call.1} parent=1 // loop_footer
      %s21 = sadd.s32 1, %s17
    $region7: #{tpu_custom_call.1} parent=1 // loop_footer_branch
      %16 = sbr.rel target = $region3
    $region8: #{tpu_custom_call.1} parent=1 // loop_exit
      _
    %352 = vsyncpa [#allocation3], 1
    %s353 = scalar_lea.sflag [#allocation3], 1
    %354 = vsyncpa %s353, 1
    %355 = vsyncpa [#allocation6], 1
    %s356 = scalar_lea.sflag [#allocation6], 1
    %357 = vsyncpa %s356, 1
    %358 = vsyncpa [#allocation4], 1
    %s359 = scalar_lea.sflag [#allocation4], 1
    %360 = vsyncpa %s359, 1

</llo_original>
